<compile_context>
chip_gen: v7x
topology: tpu7x:2x2x1
jax: 0.10.0
libtpu: 0.0.40
codegen_flags: <defaults>
</compile_context>

<pallas_src>
import functools

import jax
import jax.numpy as jnp
from jax import lax
from jax.experimental import pallas as pl
from jax.experimental.pallas import tpu as pltpu


def _ste_kernel(idx_ref, wf_ref, k_ref, out_ref, *, f1, tv_tile):
    # idx_ref : (1, 1, tv_tile) int32  packed indices: dow | ((tod+7) << 16)
    # wf_ref  : (C, F1)   f32          fused weight  W_ste_te @ W_te (resident)
    # k_ref   : (C, tv_tile) f32       per-(t,v) constant (se term + folded biases)
    # out_ref : (1, C, tv_tile) f32
    idx = idx_ref[0]                                    # (1, tv_tile) int32
    dow = jnp.bitwise_and(idx, 0xFFFF)                  # day-of-week row
    tod = jnp.right_shift(idx, 16)                      # time-of-day row (already +7)

    f_iota = lax.broadcasted_iota(jnp.int32, (f1, tv_tile), 0)
    # Combined one-hot (transposed): row f, lane n is 1 iff f==dow[n] or f==7+tod[n].
    # dow and tod+7 live in disjoint ranges, so a single OR + one cast suffices.
    oh = ((f_iota == dow) | (f_iota == tod)).astype(jnp.float32)     # (F1, tile)

    out = jnp.dot(wf_ref[...], oh, preferred_element_type=jnp.float32)  # (C, tile)
    out_ref[0] = (out + k_ref[...]).astype(out_ref.dtype)


def _pick_tv_tile(tv: int) -> int:
    """Largest lane tile (multiple of 128, <= 2048) dividing tv; else full extent."""
    if tv % 128 != 0:
        return tv
    tile = min(2048, tv)
    tile -= tile % 128
    while tile > 128 and tv % tile != 0:
        tile -= 128
    return tile


@functools.partial(jax.jit, static_argnames=("n_time_of_day",))
def ste_forward(te_raw, se, w_te, b_te, w_ste, b_ste, *, n_time_of_day):
    """te_raw: [B,2,T,V] int, se: [SE, V].  Returns [B, C, T, V] float32."""
    B, _, T, V = te_raw.shape
    F1 = 7 + n_time_of_day
    TE = w_te.shape[0]          # te_channel
    C = w_ste.shape[0]          # in_channel
    TV = T * V

    # ---- glue (plain JAX): fold the two linears, precompute constants --------
    w_te32 = w_te.astype(jnp.float32)                 # (TE, F1)
    w_ste32 = w_ste.astype(jnp.float32)               # (C, TE+SE)
    w_ste_te = w_ste32[:, :TE]                        # (C, TE)
    w_ste_se = w_ste32[:, TE:]                        # (C, SE)
    wf = w_ste_te @ w_te32                            # (C, F1) fused weight
    k = (w_ste_se @ se.astype(jnp.float32)            # (C, V)  se term
         + (w_ste_te @ b_te.astype(jnp.float32))[:, None]
         + b_ste.astype(jnp.float32)[:, None])
    k_tiled = jnp.tile(k, (1, T))                     # (C, T*V), lane = t*V+v

    # Pack both index streams into one int32 per (t, v): dow | ((tod+7) << 16).
    dow = te_raw[:, 0].reshape(B, 1, TV).astype(jnp.int32)
    tod = te_raw[:, 1].reshape(B, 1, TV).astype(jnp.int32)
    packed = dow | ((tod + 7) << 16)                  # (B, 1, T*V) int32

    tv_tile = _pick_tv_tile(TV)
    n_tiles = TV // tv_tile

    kernel = functools.partial(_ste_kernel, f1=F1, tv_tile=tv_tile)

    # ---- hot path: lane-dense (C, tv_tile) output blocks ----------------------
    out = pl.pallas_call(
        kernel,
        out_shape=jax.ShapeDtypeStruct((B, C, TV), jnp.float32),
        grid_spec=pltpu.PrefetchScalarGridSpec(
            num_scalar_prefetch=0,
            grid=(B, n_tiles),
            in_specs=[
                pl.BlockSpec((1, 1, tv_tile), lambda b, n: (b, 0, n)),  # packed indices
                pl.BlockSpec((C, F1), lambda b, n: (0, 0)),             # fused weight (resident)
                pl.BlockSpec((C, tv_tile), lambda b, n: (0, n)),        # constant term
            ],
            out_specs=pl.BlockSpec((1, C, tv_tile), lambda b, n: (b, 0, n)),
        ),
        compiler_params=pltpu.CompilerParams(
            dimension_semantics=("parallel", "parallel")),
    )(packed, wf, k_tiled)

    # NCHW is a free metadata reshape: lane axis was t*V+v.
    return out.reshape(B, C, T, V)


def _reference(te_raw, se, w_te, b_te, w_ste, b_ste, n_time_of_day):
    """Pure-JAX reference mirroring the PyTorch forward."""
    dow = jax.nn.one_hot(te_raw[:, 0], 7, dtype=jnp.float32)
    tod = jax.nn.one_hot(te_raw[:, 1], n_time_of_day, dtype=jnp.float32)
    te = jnp.concatenate([dow, tod], axis=-1)                   # (B,T,V,F1)
    te = jnp.einsum('btvc,oc->botv', te, w_te) + b_te[None, :, None, None]
    B, _, T, V = te.shape
    se_b = jnp.broadcast_to(se[None, :, None, :], (B, se.shape[0], T, V))
    ste = jnp.concatenate([te, se_b], axis=1)                   # (B, TE+SE, T, V)
    out = jnp.einsum('bctv,oc->botv', ste, w_ste) + b_ste[None, :, None, None]
    return out


if __name__ == "__main__":
    # small, module-consistent shapes
    B, T, V = 2, 8, 16
    n_time_of_day = 24
    in_channel = 4
    se_channel = 16
    te_channel = 16
    F1 = 7 + n_time_of_day

    key = jax.random.PRNGKey(0)
    k_dow, k_tod, k_se, k_w1, k_b1, k_w2, k_b2 = jax.random.split(key, 7)

    te_raw = jnp.stack(
        [jax.random.randint(k_dow, (B, T, V), 0, 7),
         jax.random.randint(k_tod, (B, T, V), 0, n_time_of_day)],
        axis=1).astype(jnp.int32)                       # [B, 2, T, V]
    se = jax.random.normal(k_se, (se_channel, V), dtype=jnp.float32)

    # deterministic parameter init (PyTorch Linear-style shapes: [out, in])
    w_te = jax.random.normal(k_w1, (te_channel, F1), dtype=jnp.float32) * 0.1
    b_te = jax.random.normal(k_b1, (te_channel,), dtype=jnp.float32) * 0.1
    w_ste = jax.random.normal(k_w2, (in_channel, te_channel + se_channel),
                              dtype=jnp.float32) * 0.1
    b_ste = jax.random.normal(k_b2, (in_channel,), dtype=jnp.float32) * 0.1

    out = ste_forward(te_raw, se, w_te, b_te, w_ste, b_ste,
                      n_time_of_day=n_time_of_day)
    out = jax.block_until_ready(out)

    ref = _reference(te_raw, se, w_te, b_te, w_ste, b_ste, n_time_of_day)
    assert out.shape == (B, in_channel, T, V), out.shape
    assert jnp.allclose(out, ref, atol=1e-4, rtol=1e-4), "mismatch vs reference"

    print("KERNEL_OK")
</pallas_src>

<mosaic_0001>
module attributes {stable_mosaic.version = 11 : i64} {
  func.func @_ste_kernel(%arg0: i32, %arg1: i32, %arg2: memref<1x1x128xi32, #tpu.memory_space<vmem>>, %arg3: memref<4x31xf32, #tpu.memory_space<vmem>>, %arg4: memref<4x128xf32, #tpu.memory_space<vmem>>, %arg5: memref<1x4x128xf32, #tpu.memory_space<vmem>>) attributes {dimension_semantics = [#tpu.dimension_semantics<parallel>, #tpu.dimension_semantics<parallel>], iteration_bounds = array<i64: 2, 1>, scalar_prefetch = 0 : i64, scratch_operands = 0 : i64, tpu.core_type = #tpu.core_type<tc>, window_params = [{transform_indices = @transform_0, window_bounds = array<i64: 1, 1, 128>}, {pipeline_mode = #tpu.pipeline_mode<synchronous>, transform_indices = @transform_1, window_bounds = array<i64: 4, 31>}, {transform_indices = @transform_2, window_bounds = array<i64: 4, 128>}, {transform_indices = @transform_3, window_bounds = array<i64: 1, 4, 128>}]} {
    %c0 = arith.constant 0 : index
    %c0_0 = arith.constant 0 : index
    %c0_1 = arith.constant 0 : index
    %0 = vector.load %arg2[%c0, %c0_0, %c0_1] : memref<1x1x128xi32, #tpu.memory_space<vmem>>, vector<1x1x128xi32>
    %1 = vector.shape_cast %0 : vector<1x1x128xi32> to vector<1x128xi32>
    %c65535_i32 = arith.constant 65535 : i32
    %2 = vector.broadcast %c65535_i32 : i32 to vector<1x128xi32>
    %3 = arith.andi %1, %2 : vector<1x128xi32>
    %c16_i32 = arith.constant 16 : i32
    %4 = vector.broadcast %c16_i32 : i32 to vector<1x128xi32>
    %5 = arith.shrsi %1, %4 : vector<1x128xi32>
    %6 = tpu.iota {dimensions = array<i32: 0>} : vector<31x128xi32>
    %7 = vector.broadcast %3 : vector<1x128xi32> to vector<31x128xi32>
    %8 = arith.cmpi eq, %6, %7 : vector<31x128xi32>
    %9 = vector.broadcast %5 : vector<1x128xi32> to vector<31x128xi32>
    %10 = arith.cmpi eq, %6, %9 : vector<31x128xi32>
    %11 = arith.ori %8, %10 : vector<31x128xi1>
    %12 = arith.extui %11 : vector<31x128xi1> to vector<31x128xi32>
    %13 = arith.sitofp %12 : vector<31x128xi32> to vector<31x128xf32>
    %c0_2 = arith.constant 0 : index
    %c0_3 = arith.constant 0 : index
    %14 = vector.load %arg3[%c0_2, %c0_3] : memref<4x31xf32, #tpu.memory_space<vmem>>, vector<4x31xf32>
    %cst = arith.constant dense<0.000000e+00> : vector<4x128xf32>
    %15 = tpu.matmul %14, %13, %cst {dimension_numbers = #tpu.dot_dimension_numbers<[1], [0], [0], [1], [0, 0, 1, 1], [], []>} : vector<4x31xf32>, vector<31x128xf32>, vector<4x128xf32> -> vector<4x128xf32>
    %c0_4 = arith.constant 0 : index
    %c0_5 = arith.constant 0 : index
    %16 = vector.load %arg4[%c0_4, %c0_5] : memref<4x128xf32, #tpu.memory_space<vmem>>, vector<4x128xf32>
    %17 = arith.addf %15, %16 : vector<4x128xf32>
    %c0_6 = arith.constant 0 : index
    %c0_7 = arith.constant 0 : index
    %c0_8 = arith.constant 0 : index
    %18 = vector.load %arg5[%c0_6, %c0_7, %c0_8] : memref<1x4x128xf32, #tpu.memory_space<vmem>>, vector<1x4x128xf32>
    %19 = vector.shape_cast %18 : vector<1x4x128xf32> to vector<4x128xf32>
    %20 = vector.shape_cast %17 : vector<4x128xf32> to vector<1x4x128xf32>
    tpu.vector_store %arg5[%c0_6, %c0_7, %c0_8], %20 {strides = array<i32>} : memref<1x4x128xf32, #tpu.memory_space<vmem>>, vector<1x4x128xf32>,
    return
  }
  func.func @transform_0(%arg0: i32, %arg1: i32) -> (i32, i32, i32) {
    %c0_i32 = arith.constant 0 : i32
    %c0_i32_0 = arith.constant 0 : i32
    return %arg0, %c0_i32, %arg1 : i32, i32, i32
  }
  func.func @transform_1(%arg0: i32, %arg1: i32) -> (i32, i32) {
    %c0_i32 = arith.constant 0 : i32
    %c0_i32_0 = arith.constant 0 : i32
    %c0_i32_1 = arith.constant 0 : i32
    return %c0_i32, %c0_i32_0 : i32, i32
  }
  func.func @transform_2(%arg0: i32, %arg1: i32) -> (i32, i32) {
    %c0_i32 = arith.constant 0 : i32
    %c0_i32_0 = arith.constant 0 : i32
    return %c0_i32, %arg1 : i32, i32
  }
  func.func @transform_3(%arg0: i32, %arg1: i32) -> (i32, i32, i32) {
    %c0_i32 = arith.constant 0 : i32
    %c0_i32_0 = arith.constant 0 : i32
    return %arg0, %c0_i32, %arg1 : i32, i32, i32
  }
}

</mosaic_0001>

<llo_original>
// kernel: tile.9
$region0: #{tile.9}
  %s0 = inlined_call_operand.vmem [shape: f32[4,8,16], index: 0, kind: input, shape index: {}]
  %s1 = inlined_call_operand.vmem [shape: f32[4,128], index: 1, kind: output, shape index: {}]
  $region1: #{tile.9} parent=0
    #allocation0 [shape = 'u8[4096]{0}', space=vmem, size = 0x1000, scoped, tag = 'scoped mem for output reshape']
    %v2 = vld [vmem:[%s0] ss:$8 sm:$0xf]
    %vm3 = vcmask 130048
    %4 = vst.msk [vmem:[#allocation0] sm:$0xf] %vm3, %v2
    %s5 = scalar_lea.vmem %s0, 7
    %v6 = vld [vmem:[%s5] ss:$8 sm:$0xf]
    %7 = vrot.lane.b32.xlu0 %v6, 112
    %v8 = vpop.permute.xlu0 %7
    %vm9 = vcmask 1048448
    %10 = vst.msk [vmem:[#allocation0] sm:$0xf] %vm9, %v8
    %s11 = scalar_lea.vmem %s0, 6
    %v12 = vld [vmem:[%s11] ss:$8 sm:$0xf]
    %13 = vrot.lane.b32.xlu0 %v12, 96
    %v14 = vpop.permute.xlu0 %13
    %vm15 = vcmask 917248
    %16 = vst.msk [vmem:[#allocation0] sm:$0xf] %vm15, %v14
    %s17 = scalar_lea.vmem %s0, 5
    %v18 = vld [vmem:[%s17] ss:$8 sm:$0xf]
    %19 = vrot.lane.b32.xlu0 %v18, 80
    %v20 = vpop.permute.xlu0 %19
    %vm21 = vcmask 786048
    %22 = vst.msk [vmem:[#allocation0] sm:$0xf] %vm21, %v20
    %s23 = scalar_lea.vmem %s0, 4
    %v24 = vld [vmem:[%s23] ss:$8 sm:$0xf]
    %25 = vrot.lane.b32.xlu0 %v24, 64
    %v26 = vpop.permute.xlu0 %25
    %vm27 = vcmask 654848
    %28 = vst.msk [vmem:[#allocation0] sm:$0xf] %vm27, %v26
    %s29 = scalar_lea.vmem %s0, 3
    %v30 = vld [vmem:[%s29] ss:$8 sm:$0xf]
    %31 = vrot.lane.b32.xlu0 %v30, 48
    %v32 = vpop.permute.xlu0 %31
    %vm33 = vcmask 523648
    %34 = vst.msk [vmem:[#allocation0] sm:$0xf] %vm33, %v32
    %s35 = scalar_lea.vmem %s0, 2
    %v36 = vld [vmem:[%s35] ss:$8 sm:$0xf]
    %37 = vrot.lane.b32.xlu0 %v36, 32
    %v38 = vpop.permute.xlu0 %37
    %vm39 = vcmask 392448
    %40 = vst.msk [vmem:[#allocation0] sm:$0xf] %vm39, %v38
    %s41 = scalar_lea.vmem %s0, 1
    %v42 = vld [vmem:[%s41] ss:$8 sm:$0xf]
    %43 = vrot.lane.b32.xlu0 %v42, 16
    %v44 = vpop.permute.xlu0 %43
    %vm45 = vcmask 261248
    %46 = vst.msk [vmem:[#allocation0] sm:$0xf] %vm45, %v44
    %s48 = sshllo.u32 0, 4
    %v50 = vld [vmem:[#allocation0] sm:%s48]
    %s51 = sshllo.u32 0, 4
    %52 = vst [vmem:[%s1] sm:%s51] %v50

// kernel: ste_forward.1
$region0: #{ste_forward.1}
  #allocation0 [shape = 'u32[]', space=smem, size = 0x4, offset = 0x4, fixed_abs, tag = 'smem constant byte address 0x4 - core index']
  #allocation1 [shape = 'u32[144,128]{1,0:T(1,128)}', space=vmem, size = 0x12000, scoped, tag = 'internal scratch']
  %s0 = inlined_call_operand.vmem [shape: s32[2,1,128], index: 0, kind: input, shape index: {}]
  %s1 = inlined_call_operand.vmem [shape: f32[4,31], index: 1, kind: input, shape index: {}]
  %s2 = inlined_call_operand.vmem [shape: f32[4,128], index: 2, kind: input, shape index: {}]
  %s3 = inlined_call_operand.vmem [shape: f32[2,4,128], index: 3, kind: output, shape index: {}]
  %s4 = sld [smem:[#allocation0]]
  $region45: #{ste_forward.1} parent=0
    _
  %s6 = ssub.s32 1, %s4
  %s7 = scalar_select 0, %s6, %s4
  loop: start=0, step=1, limit=4
  $region2: #{ste_forward.1} parent=0 // loop_pre_header
    _
  $region3: #{ste_forward.1} parent=0 // loop_header
    %s9 = sphi 0, %s13
    %p10 = scmp.ge.s32.totalorder %s9, 4
    %s16 = sphi 0, %s28
    %s17 = sphi 0, %s24
    %s18 = sphi 0, %s16
    %s19 = sphi 0, %s17
    %s20 = sphi 0, %s18
    %s21 = sphi 0, %s19
    %s33 = sphi 0, %s35
    %s36 = sphi 0, %s33
    %s37 = sphi 0, %s36
    %s53 = sphi 0, %s37
    %s57 = sphi 0, %s57
    %s59 = sphi 0, %s57
    %s60 = sphi 0, %s59
    %s74 = sphi 0, %s60
    %s80 = sphi 0, %s82
    %s83 = sphi 0, %s80
    %s84 = sphi 0, %s83
    %s100 = sphi 0, %s84
    %s108 = sphi 0, %s110
    %s111 = sphi 0, %s108
    %s112 = sphi 0, %s111
    %s128 = sphi 0, %s112
  $region4: #{ste_forward.1} parent=0 // loop_header_branch
    %12 = sbr.rel (%p10) target = $region8
  $region5: #{ste_forward.1} parent=0 // loop_body
    %s14 = ssub.s32 %s9, 1
    %s15 = ssub.s32 %s9, 2
    %s22 = sadd.s32 1, %s17
    %p23 = scmp.ge.s32.totalorder %s22, 1
    %s24 = scalar_select %p23, 0, %s22
    %s25 = sadd.s32 1, %s16
    %s26 = scalar_select %p23, %s25, %s16
    %p27 = scmp.ge.s32.totalorder %s26, 2
    %s28 = scalar_select %p27, 0, %s26
    %s29 = ssub.s32 %s16, %s28
    %s30 = ssub.s32 %s17, %s24
    %s31 = sor.u32 %s29, %s30
    %p32 = scmp.eq.s32.totalorder %s31, 0
    %s34 = sadd.s32 %s33, 1
    %s35 = scalar_select %p32, %s33, %s34
    %p38 = pneg %p32
    %p39 = scmp.eq.s32.totalorder %s9, 1
    %p40 = por %p38, %p39
    %p41 = scmp.ne.s32.totalorder %s33, %s36
    %p42 = scmp.eq.s32.totalorder %s9, 0
    %p43 = por %p41, %p42
    %p44 = scmp.ne.s32.totalorder %s33, %s36
    %p45 = scmp.eq.s32.totalorder %s14, 1
    %p46 = por %p44, %p45
    %p47 = scmp.ne.s32.totalorder %s36, %s37
    %p48 = scmp.eq.s32.totalorder %s14, 0
    %p49 = por %p47, %p48
    %p50 = scmp.ne.s32.totalorder %s36, %s37
    %p51 = scmp.eq.s32.totalorder %s15, 1
    %p52 = por %p50, %p51
    %p54 = scmp.ne.s32.totalorder %s37, %s53
    %p55 = scmp.eq.s32.totalorder %s15, 0
    %p56 = por %p54, %p55
    %s58 = sadd.s32 %s57, 1
    %p61 = scmp.eq.s32.totalorder %s9, 1
    %p62 = scmp.ne.s32.totalorder %s57, %s59
    %p63 = scmp.eq.s32.totalorder %s9, 0
    %p64 = por %p62, %p63
    %p65 = scmp.ne.s32.totalorder %s57, %s59
    %p66 = scmp.eq.s32.totalorder %s14, 1
    %p67 = por %p65, %p66
    %p68 = scmp.ne.s32.totalorder %s59, %s60
    %p69 = scmp.eq.s32.totalorder %s14, 0
    %p70 = por %p68, %p69
    %p71 = scmp.ne.s32.totalorder %s59, %s60
    %p72 = scmp.eq.s32.totalorder %s15, 1
    %p73 = por %p71, %p72
    %p75 = scmp.ne.s32.totalorder %s60, %s74
    %p76 = scmp.eq.s32.totalorder %s15, 0
    %p77 = por %p75, %p76
    %s78 = ssub.s32 %s17, %s24
    %p79 = scmp.eq.s32.totalorder %s78, 0
    %s81 = sadd.s32 %s80, 1
    %s82 = scalar_select %p79, %s80, %s81
    %p85 = pneg %p79
    %p86 = scmp.eq.s32.totalorder %s9, 1
    %p87 = por %p85, %p86
    %p88 = scmp.ne.s32.totalorder %s80, %s83
    %p89 = scmp.eq.s32.totalorder %s9, 0
    %p90 = por %p88, %p89
    %p91 = scmp.ne.s32.totalorder %s80, %s83
    %p92 = scmp.eq.s32.totalorder %s14, 1
    %p93 = por %p91, %p92
    %p94 = scmp.ne.s32.totalorder %s83, %s84
    %p95 = scmp.eq.s32.totalorder %s14, 0
    %p96 = por %p94, %p95
    %p97 = scmp.ne.s32.totalorder %s83, %s84
    %p98 = scmp.eq.s32.totalorder %s15, 1
    %p99 = por %p97, %p98
    %p101 = scmp.ne.s32.totalorder %s84, %s100
    %p102 = scmp.eq.s32.totalorder %s15, 0
    %p103 = por %p101, %p102
    %s104 = ssub.s32 %s16, %s28
    %s105 = ssub.s32 %s17, %s24
    %s106 = sor.u32 %s104, %s105
    %p107 = scmp.eq.s32.totalorder %s106, 0
    %s109 = sadd.s32 %s108, 1
    %s110 = scalar_select %p107, %s108, %s109
    %p113 = pneg %p107
    %p114 = scmp.eq.s32.totalorder %s9, 1
    %p115 = por %p113, %p114
    %p116 = scmp.ne.s32.totalorder %s108, %s111
    %p117 = scmp.eq.s32.totalorder %s9, 0
    %p118 = por %p116, %p117
    %p119 = scmp.ne.s32.totalorder %s108, %s111
    %p120 = scmp.eq.s32.totalorder %s14, 1
    %p121 = por %p119, %p120
    %p122 = scmp.ne.s32.totalorder %s111, %s112
    %p123 = scmp.eq.s32.totalorder %s14, 0
    %p124 = por %p122, %p123
    %p125 = scmp.ne.s32.totalorder %s111, %s112
    %p126 = scmp.eq.s32.totalorder %s15, 1
    %p127 = por %p125, %p126
    %p129 = scmp.ne.s32.totalorder %s112, %s128
    %p130 = scmp.eq.s32.totalorder %s15, 0
    %p131 = por %p129, %p130
    %p132 = scmp.le.s32.totalorder 1, %s9
    %p133 = scmp.lt.s32.totalorder %s9, 3
    %p134 = pnand %p132, %p133
    %p135 = pneg %p134
    // Predicated region
    $region9: #{ste_forward.1} parent=5 // pred_check
      _
    $region10: #{ste_forward.1} parent=5 // pred_check_branch
      %137 = sbr.rel (%p134) target = $region12
    $region11: #{ste_forward.1} parent=5 // pred_region
      %s138 = ssub.s32 %s9, 1
      // Predicated region
      $region13: #{ste_forward.1} parent=11 // pred_check
        %p139 = pneg %p70
      $region14: #{ste_forward.1} parent=11 // pred_check_branch
        %141 = sbr.rel (%p139) target = $region16
      $region15: #{ste_forward.1} parent=11 // pred_region
        _
      $region16: #{ste_forward.1} parent=11 // pred_fallthru
        _
      // Predicated region
      $region17: #{ste_forward.1} parent=11 // pred_check
        %p142 = pneg %p96
      $region18: #{ste_forward.1} parent=11 // pred_check_branch
        %144 = sbr.rel (%p142) target = $region20
      $region19: #{ste_forward.1} parent=11 // pred_region
        %p145 = scmp.lt.s32.totalorder %s19, 0
        %s146 = scalar_select %p145, %s19, 0
        %s147 = smul.addr %s146, 4
        %s148 = scalar_lea.vmem %s2, %s147
      $region20: #{ste_forward.1} parent=11 // pred_fallthru
        _
    $region12: #{ste_forward.1} parent=5 // pred_fallthru
      _
    %p149 = scmp.lt.s32.totalorder %s9, 2
    // Predicated region
    $region21: #{ste_forward.1} parent=5 // pred_check
      %p150 = pneg %p149
    $region22: #{ste_forward.1} parent=5 // pred_check_branch
      %152 = sbr.rel (%p150) target = $region24
    $region23: #{ste_forward.1} parent=5 // pred_region
      // Predicated region
      $region25: #{ste_forward.1} parent=23 // pred_check
        %p153 = pneg %p43
      $region26: #{ste_forward.1} parent=23 // pred_check_branch
        %155 = sbr.rel (%p153) target = $region28
      $region27: #{ste_forward.1} parent=23 // pred_region
        %p156 = scmp.lt.s32.totalorder %s16, 1
        %s157 = scalar_select %p156, %s16, 1
        %p158 = scmp.lt.s32.totalorder %s17, 0
        %s159 = scalar_select %p158, %s17, 0
        %s160 = sadd.s32 %s159, %s157
        %s161 = scalar_lea.vmem %s0, %s160
      $region28: #{ste_forward.1} parent=23 // pred_fallthru
        _
    $region24: #{ste_forward.1} parent=5 // pred_fallthru
      _
    %p162 = scmp.le.s32.totalorder 1, %s9
    %p163 = scmp.lt.s32.totalorder %s9, 3
    %p164 = pnand %p162, %p163
    %p165 = pneg %p164
    // Predicated region
    $region29: #{ste_forward.1} parent=5 // pred_check
      _
    $region30: #{ste_forward.1} parent=5 // pred_check_branch
      %167 = sbr.rel (%p164) target = $region32
    $region31: #{ste_forward.1} parent=5 // pred_region
      %s168 = ssub.s32 %s9, 1
      %p169 = scmp.lt.s32.totalorder %s18, 1
      %s170 = scalar_select %p169, %s18, 1
      %p171 = scmp.lt.s32.totalorder %s19, 0
      %s172 = scalar_select %p171, %s19, 0
      %s173 = sadd.s32 %s172, %s170
      %s174 = scalar_lea.vmem %s0, %s173
      %p175 = pneg %p49
      %p176 = pneg %p46
      %p177 = pneg %p70
      %p178 = pneg %p67
      %p179 = scmp.lt.s32.totalorder %s19, 0
      %s180 = scalar_select %p179, %s19, 0
      %s181 = smul.addr %s180, 4
      %s182 = scalar_lea.vmem %s2, %s181
      %p183 = pneg %p96
      %p184 = pneg %p93
      %p185 = pneg %p124
      %p186 = pneg %p121
      %p187 = scmp.lt.s32.totalorder %s18, 1
      %s188 = scalar_select %p187, %s18, 1
      %p189 = scmp.lt.s32.totalorder %s19, 0
      %s190 = scalar_select %p189, %s19, 0
      %s191 = sadd.s32 %s190, %s188
      %s192 = smul.addr %s191, 4
      %s193 = scalar_lea.vmem %s3, %s192
      %p194 = scmp.lt.s32.totalorder %s18, 1
      %s195 = scalar_select %p194, %s18, 1
      %p196 = scmp.lt.s32.totalorder %s19, 0
      %s197 = scalar_select %p196, %s19, 0
      %s198 = sadd.s32 %s197, %s195
      %s199 = scalar_lea.vmem %s0, %s198
      %p200 = scmp.lt.s32.totalorder %s19, 0
      %s201 = scalar_select %p200, %s19, 0
      %s202 = smul.addr %s201, 4
      %s203 = scalar_lea.vmem %s2, %s202
      %p204 = scmp.lt.s32.totalorder %s18, 1
      %s205 = scalar_select %p204, %s18, 1
      %p206 = scmp.lt.s32.totalorder %s19, 0
      %s207 = scalar_select %p206, %s19, 0
      %s208 = sadd.s32 %s207, %s205
      %s209 = smul.addr %s208, 4
      %s210 = scalar_lea.vmem %s3, %s209
      %v211 = vld [vmem:[%s199] sm:$0x1]
      %v212 = vand.u32 %v211, 65535
      %v213 = vshra.s32 %v211, 16
      %v214 = vlaneseq
      %v215 = vshrl.u32 %v214, 7
      %v216 = vadd.s32 %v215, 8
      %v217 = vadd.s32 %v215, 16
      %v218 = vadd.s32 %v215, 24
      %v219 = vlaneseq
      %v220 = vshrl.u32 %v219, 7
      %v221 = vsub.s32 0, %v220
      %v222 = vrot.slane %v212, %v221
      %vm223 = vcmp.eq.s32.totalorder %v215, %v222
      %vm224 = vcmp.eq.s32.totalorder %v216, %v222
      %vm225 = vcmp.eq.s32.totalorder %v217, %v222
      %vm226 = vcmp.eq.s32.totalorder %v218, %v222
      %v227 = vlaneseq
      %v228 = vshrl.u32 %v227, 7
      %v229 = vsub.s32 0, %v228
      %v230 = vrot.slane %v213, %v229
      %vm231 = vcmp.eq.s32.totalorder %v215, %v230
      %vm232 = vcmp.eq.s32.totalorder %v216, %v230
      %vm233 = vcmp.eq.s32.totalorder %v217, %v230
      %vm234 = vcmp.eq.s32.totalorder %v218, %v230
      %vm235 = vmor %vm223, %vm231
      %vm236 = vmor %vm224, %vm232
      %vm237 = vmor %vm225, %vm233
      %vm238 = vmor %vm226, %vm234
      %v239 = vsel %vm235, 1, 0
      %v240 = vsel %vm236, 1, 0
      %v241 = vsel %vm237, 1, 0
      %v242 = vsel %vm238, 1, 0
      %v243 = vcvt.s32.f32 %v239
      %v244 = vcvt.s32.f32 %v240
      %v245 = vcvt.s32.f32 %v241
      %v246 = vcvt.s32.f32 %v242
      %v247 = vld [vmem:[%s1] sm:$0xf]
      %v248 = vld [vmem:[%s203] sm:$0xf]
      %vm249 = vcmask 252928
      %v251 = vsel %vm249, %v247, 0
      %vm253 = vcmask 1046528
      %v255 = vsel %vm253, %v246, 0
      %257 = vmatprep.subr.mxu0 0.0
      %258 = vmatpush1.msra.mxu0 %v243
      %259 = vmatprep.subr.mxu0 0.0
      %260 = vmatpush1.msra.mxu0 %v244
      %261 = vmatprep.subr.mxu0 0.0
      %262 = vmatpush1.msra.mxu0 %v245
      %263 = vmatprep.subr.mxu0 0.0
      %264 = vmatpush1.msra.mxu0 %v255
      %265 = vmatprep.subr.mxu0 0.0
      %266 = vmatpush1.msra.mxu0 0.0
      %267 = vmatprep.subr.mxu0 0.0
      %268 = vmatpush1.msra.mxu0 0.0
      %269 = vmatprep.subr.mxu0 0.0
      %270 = vmatpush1.msra.mxu0 0.0
      %271 = vmatprep.subr.mxu0 0.0
      %272 = vmatpush1.msra.mxu0 0.0
      %273 = vmatprep.subr.mxu0 0.0
      %274 = vmatpush1.msra.mxu0 0.0
      %275 = vmatprep.subr.mxu0 0.0
      %276 = vmatpush1.msra.mxu0 0.0
      %277 = vmatprep.subr.mxu0 0.0
      %278 = vmatpush1.msra.mxu0 0.0
      %279 = vmatprep.subr.mxu0 0.0
      %280 = vmatpush1.msra.mxu0 0.0
      %281 = vmatprep.subr.mxu0 0.0
      %282 = vmatpush1.msra.mxu0 0.0
      %283 = vmatprep.subr.mxu0 0.0
      %284 = vmatpush1.msra.mxu0 0.0
      %285 = vmatprep.subr.mxu0 0.0
      %286 = vmatpush1.msra.mxu0 0.0
      %287 = vmatprep.subr.mxu0 0.0
      %288 = vmatpush1.msra.mxu0 0.0
      %289 = vmatprep.subr.mxu0 0.0
      %290 = vmatpush1.msra.mxu0 0.0
      %291 = vmatprep.subr.mxu0 0.0
      %292 = vmatpush1.msra.mxu0 0.0
      %293 = vmatprep.subr.mxu0 0.0
      %294 = vmatpush1.msra.mxu0 0.0
      %295 = vmatprep.subr.mxu0 0.0
      %296 = vmatpush1.msra.mxu0 0.0
      %297 = vmatprep.subr.mxu0 0.0
      %298 = vmatpush1.msra.mxu0 0.0
      %299 = vmatprep.subr.mxu0 0.0
      %300 = vmatpush1.msra.mxu0 0.0
      %301 = vmatprep.subr.mxu0 0.0
      %302 = vmatpush1.msra.mxu0 0.0
      %303 = vmatprep.subr.mxu0 0.0
      %304 = vmatpush1.msra.mxu0 0.0
      %305 = vmatprep.subr.mxu0 0.0
      %306 = vmatpush1.msra.mxu0 0.0
      %307 = vmatprep.subr.mxu0 0.0
      %308 = vmatpush1.msra.mxu0 0.0
      %309 = vmatprep.subr.mxu0 0.0
      %310 = vmatpush1.msra.mxu0 0.0
      %311 = vmatprep.subr.mxu0 0.0
      %312 = vmatpush1.msra.mxu0 0.0
      %313 = vmatprep.subr.mxu0 0.0
      %314 = vmatpush1.msra.mxu0 0.0
      %315 = vmatprep.subr.mxu0 0.0
      %316 = vmatpush1.msra.mxu0 0.0
      %317 = vmatprep.subr.mxu0 0.0
      %318 = vmatpush1.msra.mxu0 0.0
      %319 = vmatprep.subr.mxu0 0.0
      %320 = vmatpush1.msra.mxu0 0.0
      %321 = vmatprep.mubr.f32.mxu0 0.0
      %322 = vmatmul.mubr.f32.gmra.mrb[0].mxu0 %v251
      %v323 = vpop.f32.mrb[0].mxu0
      %v324 = vadd.f32 %v248, %v323
      %v325 = vpop.f32.mrb[0].mxu0
      %326 = vdwg.mxu0
      %327 = vst [vmem:[%s210] sm:$0xf] %v324
      %p328 = scmp.lt.s32.totalorder %s18, 1
      %s329 = scalar_select %p328, %s18, 1
      %p330 = scmp.lt.s32.totalorder %s19, 0
      %s331 = scalar_select %p330, %s19, 0
      %s332 = sadd.s32 %s331, %s329
      %s333 = smul.addr %s332, 4
      %s334 = scalar_lea.vmem %s3, %s333
      // Predicated region
      $region33: #{ste_forward.1} parent=31 // pred_check
        %p335 = pneg %p121
      $region34: #{ste_forward.1} parent=31 // pred_check_branch
        %337 = sbr.rel (%p335) target = $region36
      $region35: #{ste_forward.1} parent=31 // pred_region
        _
      $region36: #{ste_forward.1} parent=31 // pred_fallthru
        _
    $region32: #{ste_forward.1} parent=5 // pred_fallthru
      _
    %p338 = scmp.le.s32.totalorder 2, %s9
    // Predicated region
    $region37: #{ste_forward.1} parent=5 // pred_check
      %p339 = pneg %p338
    $region38: #{ste_forward.1} parent=5 // pred_check_branch
      %341 = sbr.rel (%p339) target = $region40
    $region39: #{ste_forward.1} parent=5 // pred_region
      %s342 = ssub.s32 %s9, 2
      // Predicated region
      $region41: #{ste_forward.1} parent=39 // pred_check
        %p343 = pneg %p127
      $region42: #{ste_forward.1} parent=39 // pred_check_branch
        %345 = sbr.rel (%p343) target = $region44
      $region43: #{ste_forward.1} parent=39 // pred_region
        %p346 = scmp.lt.s32.totalorder %s20, 1
        %s347 = scalar_select %p346, %s20, 1
        %p348 = scmp.lt.s32.totalorder %s21, 0
        %s349 = scalar_select %p348, %s21, 0
        %s350 = sadd.s32 %s349, %s347
        %s351 = smul.addr %s350, 4
        %s352 = scalar_lea.vmem %s3, %s351
      $region44: #{ste_forward.1} parent=39 // pred_fallthru
        _
    $region40: #{ste_forward.1} parent=5 // pred_fallthru
      _
  $region6: #{ste_forward.1} parent=0 // loop_footer
    %s13 = sadd.s32 1, %s9
  $region7: #{ste_forward.1} parent=0 // loop_footer_branch
    %8 = sbr.rel target = $region3
  $region8: #{ste_forward.1} parent=0 // loop_exit
    _

</llo_original>
